<compile_context>
chip_gen: v7x
topology: tpu7x:2x2x1
jax: 0.10.0
libtpu: 0.0.40
codegen_flags: <defaults>
</compile_context>

<pallas_src>
import jax
import jax.numpy as jnp
from jax.experimental import pallas as pl
from jax.experimental.pallas import tpu as pltpu


def _round_up(a, b):
    return ((a + b - 1) // b) * b


def _rgbnet_kernel(x_ref, w0_ref, b0_ref, w1_ref, b1_ref, w2_ref, b2_ref, o_ref):
    """Folded MLP for one tile of (already row-folded) rows, fully in VMEM.

    x_ref : (TM, P*dim0) f32
    w0    : (P*dim0, P*W) bf16 (block-diagonal), b0 : (1, P*W) f32
    w1    : (P*W,   P*W) bf16 (block-diagonal),  b1 : (1, P*W) f32
    w2    : (P*W,   P*3) bf16 (block-diagonal),  b2 : (1, P*3) f32
    o_ref : (TM, P*3) f32
    """
    # Layer 0: Linear + ReLU  (bf16 MXU inputs, f32 accumulate/epilogue)
    x = x_ref[...].astype(jnp.bfloat16)
    h = jnp.dot(x, w0_ref[...], preferred_element_type=jnp.float32) + b0_ref[...]
    h = jnp.maximum(h, 0.0)

    # Hidden block (rgbnet_depth = 3 -> exactly one): Linear + ReLU
    h = jnp.dot(h.astype(jnp.bfloat16), w1_ref[...],
                preferred_element_type=jnp.float32) + b1_ref[...]
    h = jnp.maximum(h, 0.0)

    # Output layer: Linear (no activation)
    out = jnp.dot(h.astype(jnp.bfloat16), w2_ref[...],
                  preferred_element_type=jnp.float32) + b2_ref[...]
    o_ref[...] = out.astype(o_ref.dtype)


def _pack_factor(width):
    """Fold factor P so the hidden lane width P*width matches the MXU width."""
    target = 128                      # v5e / v4 / unknown: 128-wide MXU
    try:
        kind = jax.devices()[0].device_kind.lower()
        if ("v6" in kind) or ("v7" in kind):
            target = 256              # v6e / v7x: 2x256^2 MXU
    except Exception:
        pass
    return max(1, target // max(1, width))


def rgb_net_forward(x, params, *, tile_m=2048, pack=None, target_steps=8):
    """Run the RGB_Net MLP on x of shape (N, dim0). Any N is accepted."""
    (w0, b0), (w1, b1), (w2, b2) = params
    N, dim0 = x.shape
    width = w0.shape[1]
    out_dim = w2.shape[1]

    P = int(pack) if pack is not None else _pack_factor(width)
    P = max(1, P)

    # Fold P original rows into one wide row. Pad N only to a multiple of P
    # (<= P-1 junk rows); no copy at all when N % P == 0.
    n_pad = _round_up(N, P)
    if n_pad != N:
        x = jnp.pad(x, ((0, n_pad - N), (0, 0)))
    M = n_pad // P
    xf = x.reshape(M, P * dim0)       # contiguous row-major reshape: free

    # Block-diagonal weights / tiled biases, built once outside the kernel.
    eye = jnp.eye(P, dtype=jnp.float32)
    w0p = jnp.kron(eye, w0).astype(jnp.bfloat16)
    w1p = jnp.kron(eye, w1).astype(jnp.bfloat16)
    w2p = jnp.kron(eye, w2).astype(jnp.bfloat16)
    b0p = jnp.tile(b0, (1, P))
    b1p = jnp.tile(b1, (1, P))
    b2p = jnp.tile(b2, (1, P))

    # Row tile: aim for ~target_steps grid steps, capped at tile_m folded rows,
    # multiple of 8 (sublane granularity). Ragged last block -> masked writes.
    tm = _round_up(pl.cdiv(M, target_steps), 8)
    tm = max(8, min(tm, tile_m))
    grid = (pl.cdiv(M, tm),)

    full = lambda i: (0, 0)           # weights/biases: resident, never re-fetched

    # Advisory cost hint (effective math, input/output/weight traffic).
    flops = 2 * N * (dim0 * width + width * width + width * out_dim)
    bytes_accessed = (
        N * (dim0 + out_dim) * 4
        + (w0p.size + w1p.size + w2p.size) * 2
        + (b0p.size + b1p.size + b2p.size) * 4
    )

    out = pl.pallas_call(
        _rgbnet_kernel,
        out_shape=jax.ShapeDtypeStruct((M, P * out_dim), jnp.float32),
        grid_spec=pltpu.PrefetchScalarGridSpec(
            num_scalar_prefetch=0,
            grid=grid,
            in_specs=[
                pl.BlockSpec((tm, P * dim0), lambda i: (i, 0)),
                pl.BlockSpec((P * dim0, P * width), full),
                pl.BlockSpec((1, P * width), full),
                pl.BlockSpec((P * width, P * width), full),
                pl.BlockSpec((1, P * width), full),
                pl.BlockSpec((P * width, P * out_dim), full),
                pl.BlockSpec((1, P * out_dim), full),
            ],
            out_specs=pl.BlockSpec((tm, P * out_dim), lambda i: (i, 0)),
        ),
        compiler_params=pltpu.CompilerParams(
            dimension_semantics=("parallel",),
        ),
        cost_estimate=pl.CostEstimate(
            flops=flops, transcendentals=0, bytes_accessed=bytes_accessed),
    )(xf, w0p, b0p, w1p, b1p, w2p, b2p)

    # (M, P*3) is bit-identical to (n_pad, 3) row-major; slice off pad rows.
    out = out.reshape(n_pad, out_dim)
    return out[:N] if n_pad != N else out


def init_rgbnet_params(key, dim0, rgbnet_width, rgbnet_depth=3):
    """Deterministic init mimicking PyTorch Linear default (uniform(+-1/sqrt(fan_in))),
    with the final bias set to zero (as in RGB_Net.__init__)."""
    assert rgbnet_depth == 3, "kernel hardcodes the TeTriRF default depth=3 (one hidden block)"
    dims = [(dim0, rgbnet_width), (rgbnet_width, rgbnet_width), (rgbnet_width, 3)]
    params = []
    for li, (fan_in, fan_out) in enumerate(dims):
        key, kw, kb = jax.random.split(key, 3)
        bound = 1.0 / (fan_in ** 0.5)
        w = jax.random.uniform(kw, (fan_in, fan_out), jnp.float32, -bound, bound)
        if li == len(dims) - 1:
            b = jnp.zeros((1, fan_out), jnp.float32)  # nn.init.constant_(bias, 0)
        else:
            b = jax.random.uniform(kb, (1, fan_out), jnp.float32, -bound, bound)
        params.append((w, b))
    return params


def rgb_net_reference_f32(x, params):
    """Pure-f32 JAX reference (module semantics)."""
    (w0, b0), (w1, b1), (w2, b2) = params
    h = jnp.maximum(x @ w0 + b0, 0.0)
    h = jnp.maximum(h @ w1 + b1, 0.0)
    return h @ w2 + b2


def rgb_net_reference_bf16(x, params):
    """Reference that mirrors the kernel's bf16-MXU / f32-accumulate numerics."""
    (w0, b0), (w1, b1), (w2, b2) = params
    c = lambda a: a.astype(jnp.bfloat16).astype(jnp.float32)
    h = jnp.maximum(jnp.dot(c(x), c(w0)) + b0, 0.0)
    h = jnp.maximum(jnp.dot(c(h), c(w1)) + b1, 0.0)
    return jnp.dot(c(h), c(w2)) + b2


if __name__ == "__main__":
    key = jax.random.PRNGKey(0)

    dim0 = 12          # feature/view-embedding dim (small synthetic choice)
    rgbnet_width = 32
    rgbnet_depth = 3
    N = 250            # ragged row count: exercises fold-pad + ragged last block

    key, kx, kp = jax.random.split(key, 3)
    x = jax.random.normal(kx, (N, dim0), jnp.float32)
    params = init_rgbnet_params(kp, dim0, rgbnet_width, rgbnet_depth)

    out = rgb_net_forward(x, params)
    out = jax.block_until_ready(out)
    assert out.shape == (N, 3)

    # Tight check against a reference that uses the same bf16-rounded MXU inputs.
    ref_bf16 = rgb_net_reference_bf16(x, params)
    assert jnp.allclose(out, ref_bf16, atol=1e-3, rtol=1e-3), "mismatch vs bf16-rounded reference"

    # Loose sanity check against the pure-f32 module semantics.
    ref_f32 = rgb_net_reference_f32(x, params)
    assert jnp.allclose(out, ref_f32, atol=3e-2, rtol=3e-2), "mismatch vs f32 reference"

    print("KERNEL_OK")
</pallas_src>

<mosaic_0001>
module attributes {stable_mosaic.version = 11 : i64} {
  func.func @_rgbnet_kernel(%arg0: i32, %arg1: memref<8x48xf32, #tpu.memory_space<vmem>>, %arg2: memref<48x128xbf16, #tpu.memory_space<vmem>>, %arg3: memref<1x128xf32, #tpu.memory_space<vmem>>, %arg4: memref<128x128xbf16, #tpu.memory_space<vmem>>, %arg5: memref<1x128xf32, #tpu.memory_space<vmem>>, %arg6: memref<128x12xbf16, #tpu.memory_space<vmem>>, %arg7: memref<1x12xf32, #tpu.memory_space<vmem>>, %arg8: memref<8x12xf32, #tpu.memory_space<vmem>>) attributes {dimension_semantics = [#tpu.dimension_semantics<parallel>], iteration_bounds = array<i64: 8>, scalar_prefetch = 0 : i64, scratch_operands = 0 : i64, tpu.core_type = #tpu.core_type<tc>, window_params = [{transform_indices = @transform_0, window_bounds = array<i64: 8, 48>}, {pipeline_mode = #tpu.pipeline_mode<synchronous>, transform_indices = @transform_1, window_bounds = array<i64: 48, 128>}, {pipeline_mode = #tpu.pipeline_mode<synchronous>, transform_indices = @transform_2, window_bounds = array<i64: 1, 128>}, {pipeline_mode = #tpu.pipeline_mode<synchronous>, transform_indices = @transform_3, window_bounds = array<i64: 128, 128>}, {pipeline_mode = #tpu.pipeline_mode<synchronous>, transform_indices = @transform_4, window_bounds = array<i64: 1, 128>}, {pipeline_mode = #tpu.pipeline_mode<synchronous>, transform_indices = @transform_5, window_bounds = array<i64: 128, 12>}, {pipeline_mode = #tpu.pipeline_mode<synchronous>, transform_indices = @transform_6, window_bounds = array<i64: 1, 12>}, {transform_indices = @transform_7, window_bounds = array<i64: 8, 12>}]} {
    %c0 = arith.constant 0 : index
    %c0_0 = arith.constant 0 : index
    %0 = vector.load %arg1[%c0, %c0_0] : memref<8x48xf32, #tpu.memory_space<vmem>>, vector<8x48xf32>
    %1 = arith.truncf %0 : vector<8x48xf32> to vector<8x48xbf16>
    %c0_1 = arith.constant 0 : index
    %c0_2 = arith.constant 0 : index
    %2 = vector.load %arg2[%c0_1, %c0_2] : memref<48x128xbf16, #tpu.memory_space<vmem>>, vector<48x128xbf16>
    %cst = arith.constant dense<0.000000e+00> : vector<8x128xf32>
    %3 = tpu.matmul %1, %2, %cst {dimension_numbers = #tpu.dot_dimension_numbers<[1], [0], [0], [1], [0, 0, 1, 1], [], []>} : vector<8x48xbf16>, vector<48x128xbf16>, vector<8x128xf32> -> vector<8x128xf32>
    %c0_3 = arith.constant 0 : index
    %c0_4 = arith.constant 0 : index
    %4 = vector.load %arg3[%c0_3, %c0_4] : memref<1x128xf32, #tpu.memory_space<vmem>>, vector<1x128xf32>
    %5 = vector.broadcast %4 : vector<1x128xf32> to vector<8x128xf32>
    %6 = arith.addf %3, %5 : vector<8x128xf32>
    %cst_5 = arith.constant 0.000000e+00 : f32
    %7 = vector.broadcast %cst_5 : f32 to vector<8x128xf32>
    %8 = arith.maximumf %6, %7 : vector<8x128xf32>
    %9 = arith.truncf %8 : vector<8x128xf32> to vector<8x128xbf16>
    %c0_6 = arith.constant 0 : index
    %c0_7 = arith.constant 0 : index
    %10 = vector.load %arg4[%c0_6, %c0_7] : memref<128x128xbf16, #tpu.memory_space<vmem>>, vector<128x128xbf16>
    %cst_8 = arith.constant dense<0.000000e+00> : vector<8x128xf32>
    %11 = tpu.matmul %9, %10, %cst_8 {dimension_numbers = #tpu.dot_dimension_numbers<[1], [0], [0], [1], [0, 0, 1, 1], [], []>} : vector<8x128xbf16>, vector<128x128xbf16>, vector<8x128xf32> -> vector<8x128xf32>
    %c0_9 = arith.constant 0 : index
    %c0_10 = arith.constant 0 : index
    %12 = vector.load %arg5[%c0_9, %c0_10] : memref<1x128xf32, #tpu.memory_space<vmem>>, vector<1x128xf32>
    %13 = vector.broadcast %12 : vector<1x128xf32> to vector<8x128xf32>
    %14 = arith.addf %11, %13 : vector<8x128xf32>
    %cst_11 = arith.constant 0.000000e+00 : f32
    %15 = vector.broadcast %cst_11 : f32 to vector<8x128xf32>
    %16 = arith.maximumf %14, %15 : vector<8x128xf32>
    %17 = arith.truncf %16 : vector<8x128xf32> to vector<8x128xbf16>
    %c0_12 = arith.constant 0 : index
    %c0_13 = arith.constant 0 : index
    %18 = vector.load %arg6[%c0_12, %c0_13] : memref<128x12xbf16, #tpu.memory_space<vmem>>, vector<128x12xbf16>
    %cst_14 = arith.constant dense<0.000000e+00> : vector<8x12xf32>
    %19 = tpu.matmul %17, %18, %cst_14 {dimension_numbers = #tpu.dot_dimension_numbers<[1], [0], [0], [1], [0, 0, 1, 1], [], []>} : vector<8x128xbf16>, vector<128x12xbf16>, vector<8x12xf32> -> vector<8x12xf32>
    %c0_15 = arith.constant 0 : index
    %c0_16 = arith.constant 0 : index
    %20 = vector.load %arg7[%c0_15, %c0_16] : memref<1x12xf32, #tpu.memory_space<vmem>>, vector<1x12xf32>
    %21 = vector.broadcast %20 : vector<1x12xf32> to vector<8x12xf32>
    %22 = arith.addf %19, %21 : vector<8x12xf32>
    %c0_17 = arith.constant 0 : index
    %c0_18 = arith.constant 0 : index
    %23 = vector.load %arg8[%c0_17, %c0_18] : memref<8x12xf32, #tpu.memory_space<vmem>>, vector<8x12xf32>
    tpu.vector_store %arg8[%c0_17, %c0_18], %22 {strides = array<i32>} : memref<8x12xf32, #tpu.memory_space<vmem>>, vector<8x12xf32>,
    return
  }
  func.func @transform_0(%arg0: i32) -> (i32, i32) {
    %c0_i32 = arith.constant 0 : i32
    %c0_i32_0 = arith.constant 0 : i32
    return %arg0, %c0_i32 : i32, i32
  }
  func.func @transform_1(%arg0: i32) -> (i32, i32) {
    %c0_i32 = arith.constant 0 : i32
    %c0_i32_0 = arith.constant 0 : i32
    %c0_i32_1 = arith.constant 0 : i32
    return %c0_i32, %c0_i32_0 : i32, i32
  }
  func.func @transform_2(%arg0: i32) -> (i32, i32) {
    %c0_i32 = arith.constant 0 : i32
    %c0_i32_0 = arith.constant 0 : i32
    %c0_i32_1 = arith.constant 0 : i32
    return %c0_i32, %c0_i32_0 : i32, i32
  }
  func.func @transform_3(%arg0: i32) -> (i32, i32) {
    %c0_i32 = arith.constant 0 : i32
    %c0_i32_0 = arith.constant 0 : i32
    %c0_i32_1 = arith.constant 0 : i32
    return %c0_i32, %c0_i32_0 : i32, i32
  }
  func.func @transform_4(%arg0: i32) -> (i32, i32) {
    %c0_i32 = arith.constant 0 : i32
    %c0_i32_0 = arith.constant 0 : i32
    %c0_i32_1 = arith.constant 0 : i32
    return %c0_i32, %c0_i32_0 : i32, i32
  }
  func.func @transform_5(%arg0: i32) -> (i32, i32) {
    %c0_i32 = arith.constant 0 : i32
    %c0_i32_0 = arith.constant 0 : i32
    %c0_i32_1 = arith.constant 0 : i32
    return %c0_i32, %c0_i32_0 : i32, i32
  }
  func.func @transform_6(%arg0: i32) -> (i32, i32) {
    %c0_i32 = arith.constant 0 : i32
    %c0_i32_0 = arith.constant 0 : i32
    %c0_i32_1 = arith.constant 0 : i32
    return %c0_i32, %c0_i32_0 : i32, i32
  }
  func.func @transform_7(%arg0: i32) -> (i32, i32) {
    %c0_i32 = arith.constant 0 : i32
    %c0_i32_0 = arith.constant 0 : i32
    return %arg0, %c0_i32 : i32, i32
  }
}

</mosaic_0001>

<llo_original>
// kernel: tpu_custom_call.1
$region0: #{tpu_custom_call.1}
  #allocation0 [shape = 'u32[]', space=smem, size = 0x4, offset = 0x4, fixed_abs, tag = 'smem constant byte address 0x4 - core index']
  #allocation1 [shape = 'u32[144,128]{1,0:T(1,128)}', space=vmem, size = 0x12000, scoped, tag = 'internal scratch']
  %s0 = inlined_call_operand.vmem [shape: f32[63,48], index: 0, kind: input, shape index: {}]
  %s1 = inlined_call_operand.vmem [shape: bf16[48,128], index: 1, kind: input, shape index: {}]
  %s2 = inlined_call_operand.vmem [shape: f32[1,128], index: 2, kind: input, shape index: {}]
  %s3 = inlined_call_operand.vmem [shape: bf16[128,128], index: 3, kind: input, shape index: {}]
  %s4 = inlined_call_operand.vmem [shape: f32[1,128], index: 4, kind: input, shape index: {}]
  %s5 = inlined_call_operand.vmem [shape: bf16[128,12], index: 5, kind: input, shape index: {}]
  %s6 = inlined_call_operand.vmem [shape: f32[1,12], index: 6, kind: input, shape index: {}]
  %s7 = inlined_call_operand.vmem [shape: f32[63,12], index: 7, kind: output, shape index: {}]
  %s8 = sld [smem:[#allocation0]]
  $region61: #{tpu_custom_call.1} parent=0
    _
  %s10 = ssub.s32 1, %s8
  %s11 = scalar_select 0, %s10, %s8
  loop: start=0, step=1, limit=10
  $region2: #{tpu_custom_call.1} parent=0 // loop_pre_header
    _
  $region3: #{tpu_custom_call.1} parent=0 // loop_header
    %s13 = sphi 0, %s17
    %p14 = scmp.ge.s32.totalorder %s13, 10
    %s23 = sphi 0, %s25
    %s26 = sphi 0, %s23
    %s27 = sphi 0, %s26
    %s43 = sphi 0, %s27
    %s47 = sphi 0, %s47
    %s49 = sphi 0, %s47
    %s50 = sphi 0, %s49
    %s64 = sphi 0, %s50
    %s68 = sphi 0, %s68
    %s70 = sphi 0, %s68
    %s71 = sphi 0, %s70
    %s85 = sphi 0, %s71
    %s89 = sphi 0, %s89
    %s91 = sphi 0, %s89
    %s92 = sphi 0, %s91
    %s106 = sphi 0, %s92
    %s110 = sphi 0, %s110
    %s112 = sphi 0, %s110
    %s113 = sphi 0, %s112
    %s127 = sphi 0, %s113
    %s131 = sphi 0, %s131
    %s133 = sphi 0, %s131
    %s134 = sphi 0, %s133
    %s148 = sphi 0, %s134
    %s152 = sphi 0, %s152
    %s154 = sphi 0, %s152
    %s155 = sphi 0, %s154
    %s169 = sphi 0, %s155
    %s175 = sphi 0, %s177
    %s178 = sphi 0, %s175
    %s179 = sphi 0, %s178
    %s195 = sphi 0, %s179
  $region4: #{tpu_custom_call.1} parent=0 // loop_header_branch
    %16 = sbr.rel (%p14) target = $region8
  $region5: #{tpu_custom_call.1} parent=0 // loop_body
    %s18 = ssub.s32 %s13, 1
    %s19 = ssub.s32 %s13, 2
    %s20 = sadd.s32 %s13, 1
    %s21 = ssub.s32 %s13, %s20
    %p22 = scmp.eq.s32.totalorder %s21, 0
    %s24 = sadd.s32 %s23, 1
    %s25 = scalar_select %p22, %s23, %s24
    %p28 = pneg %p22
    %p29 = scmp.eq.s32.totalorder %s13, 7
    %p30 = por %p28, %p29
    %p31 = scmp.ne.s32.totalorder %s23, %s26
    %p32 = scmp.eq.s32.totalorder %s13, 0
    %p33 = por %p31, %p32
    %p34 = scmp.ne.s32.totalorder %s23, %s26
    %p35 = scmp.eq.s32.totalorder %s18, 7
    %p36 = por %p34, %p35
    %p37 = scmp.ne.s32.totalorder %s26, %s27
    %p38 = scmp.eq.s32.totalorder %s18, 0
    %p39 = por %p37, %p38
    %p40 = scmp.ne.s32.totalorder %s26, %s27
    %p41 = scmp.eq.s32.totalorder %s19, 7
    %p42 = por %p40, %p41
    %p44 = scmp.ne.s32.totalorder %s27, %s43
    %p45 = scmp.eq.s32.totalorder %s19, 0
    %p46 = por %p44, %p45
    %s48 = sadd.s32 %s47, 1
    %p51 = scmp.eq.s32.totalorder %s13, 7
    %p52 = scmp.ne.s32.totalorder %s47, %s49
    %p53 = scmp.eq.s32.totalorder %s13, 0
    %p54 = por %p52, %p53
    %p55 = scmp.ne.s32.totalorder %s47, %s49
    %p56 = scmp.eq.s32.totalorder %s18, 7
    %p57 = por %p55, %p56
    %p58 = scmp.ne.s32.totalorder %s49, %s50
    %p59 = scmp.eq.s32.totalorder %s18, 0
    %p60 = por %p58, %p59
    %p61 = scmp.ne.s32.totalorder %s49, %s50
    %p62 = scmp.eq.s32.totalorder %s19, 7
    %p63 = por %p61, %p62
    %p65 = scmp.ne.s32.totalorder %s50, %s64
    %p66 = scmp.eq.s32.totalorder %s19, 0
    %p67 = por %p65, %p66
    %s69 = sadd.s32 %s68, 1
    %p72 = scmp.eq.s32.totalorder %s13, 7
    %p73 = scmp.ne.s32.totalorder %s68, %s70
    %p74 = scmp.eq.s32.totalorder %s13, 0
    %p75 = por %p73, %p74
    %p76 = scmp.ne.s32.totalorder %s68, %s70
    %p77 = scmp.eq.s32.totalorder %s18, 7
    %p78 = por %p76, %p77
    %p79 = scmp.ne.s32.totalorder %s70, %s71
    %p80 = scmp.eq.s32.totalorder %s18, 0
    %p81 = por %p79, %p80
    %p82 = scmp.ne.s32.totalorder %s70, %s71
    %p83 = scmp.eq.s32.totalorder %s19, 7
    %p84 = por %p82, %p83
    %p86 = scmp.ne.s32.totalorder %s71, %s85
    %p87 = scmp.eq.s32.totalorder %s19, 0
    %p88 = por %p86, %p87
    %s90 = sadd.s32 %s89, 1
    %p93 = scmp.eq.s32.totalorder %s13, 7
    %p94 = scmp.ne.s32.totalorder %s89, %s91
    %p95 = scmp.eq.s32.totalorder %s13, 0
    %p96 = por %p94, %p95
    %p97 = scmp.ne.s32.totalorder %s89, %s91
    %p98 = scmp.eq.s32.totalorder %s18, 7
    %p99 = por %p97, %p98
    %p100 = scmp.ne.s32.totalorder %s91, %s92
    %p101 = scmp.eq.s32.totalorder %s18, 0
    %p102 = por %p100, %p101
    %p103 = scmp.ne.s32.totalorder %s91, %s92
    %p104 = scmp.eq.s32.totalorder %s19, 7
    %p105 = por %p103, %p104
    %p107 = scmp.ne.s32.totalorder %s92, %s106
    %p108 = scmp.eq.s32.totalorder %s19, 0
    %p109 = por %p107, %p108
    %s111 = sadd.s32 %s110, 1
    %p114 = scmp.eq.s32.totalorder %s13, 7
    %p115 = scmp.ne.s32.totalorder %s110, %s112
    %p116 = scmp.eq.s32.totalorder %s13, 0
    %p117 = por %p115, %p116
    %p118 = scmp.ne.s32.totalorder %s110, %s112
    %p119 = scmp.eq.s32.totalorder %s18, 7
    %p120 = por %p118, %p119
    %p121 = scmp.ne.s32.totalorder %s112, %s113
    %p122 = scmp.eq.s32.totalorder %s18, 0
    %p123 = por %p121, %p122
    %p124 = scmp.ne.s32.totalorder %s112, %s113
    %p125 = scmp.eq.s32.totalorder %s19, 7
    %p126 = por %p124, %p125
    %p128 = scmp.ne.s32.totalorder %s113, %s127
    %p129 = scmp.eq.s32.totalorder %s19, 0
    %p130 = por %p128, %p129
    %s132 = sadd.s32 %s131, 1
    %p135 = scmp.eq.s32.totalorder %s13, 7
    %p136 = scmp.ne.s32.totalorder %s131, %s133
    %p137 = scmp.eq.s32.totalorder %s13, 0
    %p138 = por %p136, %p137
    %p139 = scmp.ne.s32.totalorder %s131, %s133
    %p140 = scmp.eq.s32.totalorder %s18, 7
    %p141 = por %p139, %p140
    %p142 = scmp.ne.s32.totalorder %s133, %s134
    %p143 = scmp.eq.s32.totalorder %s18, 0
    %p144 = por %p142, %p143
    %p145 = scmp.ne.s32.totalorder %s133, %s134
    %p146 = scmp.eq.s32.totalorder %s19, 7
    %p147 = por %p145, %p146
    %p149 = scmp.ne.s32.totalorder %s134, %s148
    %p150 = scmp.eq.s32.totalorder %s19, 0
    %p151 = por %p149, %p150
    %s153 = sadd.s32 %s152, 1
    %p156 = scmp.eq.s32.totalorder %s13, 7
    %p157 = scmp.ne.s32.totalorder %s152, %s154
    %p158 = scmp.eq.s32.totalorder %s13, 0
    %p159 = por %p157, %p158
    %p160 = scmp.ne.s32.totalorder %s152, %s154
    %p161 = scmp.eq.s32.totalorder %s18, 7
    %p162 = por %p160, %p161
    %p163 = scmp.ne.s32.totalorder %s154, %s155
    %p164 = scmp.eq.s32.totalorder %s18, 0
    %p165 = por %p163, %p164
    %p166 = scmp.ne.s32.totalorder %s154, %s155
    %p167 = scmp.eq.s32.totalorder %s19, 7
    %p168 = por %p166, %p167
    %p170 = scmp.ne.s32.totalorder %s155, %s169
    %p171 = scmp.eq.s32.totalorder %s19, 0
    %p172 = por %p170, %p171
    %s173 = ssub.s32 %s13, %s20
    %p174 = scmp.eq.s32.totalorder %s173, 0
    %s176 = sadd.s32 %s175, 1
    %s177 = scalar_select %p174, %s175, %s176
    %p180 = pneg %p174
    %p181 = scmp.eq.s32.totalorder %s13, 7
    %p182 = por %p180, %p181
    %p183 = scmp.ne.s32.totalorder %s175, %s178
    %p184 = scmp.eq.s32.totalorder %s13, 0
    %p185 = por %p183, %p184
    %p186 = scmp.ne.s32.totalorder %s175, %s178
    %p187 = scmp.eq.s32.totalorder %s18, 7
    %p188 = por %p186, %p187
    %p189 = scmp.ne.s32.totalorder %s178, %s179
    %p190 = scmp.eq.s32.totalorder %s18, 0
    %p191 = por %p189, %p190
    %p192 = scmp.ne.s32.totalorder %s178, %s179
    %p193 = scmp.eq.s32.totalorder %s19, 7
    %p194 = por %p192, %p193
    %p196 = scmp.ne.s32.totalorder %s179, %s195
    %p197 = scmp.eq.s32.totalorder %s19, 0
    %p198 = por %p196, %p197
    %p199 = scmp.le.s32.totalorder 1, %s13
    %p200 = scmp.lt.s32.totalorder %s13, 9
    %p201 = pnand %p199, %p200
    %p202 = pneg %p201
    // Predicated region
    $region9: #{tpu_custom_call.1} parent=5 // pred_check
      _
    $region10: #{tpu_custom_call.1} parent=5 // pred_check_branch
      %204 = sbr.rel (%p201) target = $region12
    $region11: #{tpu_custom_call.1} parent=5 // pred_region
      %s205 = ssub.s32 %s13, 1
      // Predicated region
      $region13: #{tpu_custom_call.1} parent=11 // pred_check
        %p206 = pneg %p60
      $region14: #{tpu_custom_call.1} parent=11 // pred_check_branch
        %208 = sbr.rel (%p206) target = $region16
      $region15: #{tpu_custom_call.1} parent=11 // pred_region
        _
      $region16: #{tpu_custom_call.1} parent=11 // pred_fallthru
        _
      // Predicated region
      $region17: #{tpu_custom_call.1} parent=11 // pred_check
        %p209 = pneg %p81
      $region18: #{tpu_custom_call.1} parent=11 // pred_check_branch
        %211 = sbr.rel (%p209) target = $region20
      $region19: #{tpu_custom_call.1} parent=11 // pred_region
        _
      $region20: #{tpu_custom_call.1} parent=11 // pred_fallthru
        _
      // Predicated region
      $region21: #{tpu_custom_call.1} parent=11 // pred_check
        %p212 = pneg %p102
      $region22: #{tpu_custom_call.1} parent=11 // pred_check_branch
        %214 = sbr.rel (%p212) target = $region24
      $region23: #{tpu_custom_call.1} parent=11 // pred_region
        _
      $region24: #{tpu_custom_call.1} parent=11 // pred_fallthru
        _
      // Predicated region
      $region25: #{tpu_custom_call.1} parent=11 // pred_check
        %p215 = pneg %p123
      $region26: #{tpu_custom_call.1} parent=11 // pred_check_branch
        %217 = sbr.rel (%p215) target = $region28
      $region27: #{tpu_custom_call.1} parent=11 // pred_region
        _
      $region28: #{tpu_custom_call.1} parent=11 // pred_fallthru
        _
      // Predicated region
      $region29: #{tpu_custom_call.1} parent=11 // pred_check
        %p218 = pneg %p144
      $region30: #{tpu_custom_call.1} parent=11 // pred_check_branch
        %220 = sbr.rel (%p218) target = $region32
      $region31: #{tpu_custom_call.1} parent=11 // pred_region
        _
      $region32: #{tpu_custom_call.1} parent=11 // pred_fallthru
        _
      // Predicated region
      $region33: #{tpu_custom_call.1} parent=11 // pred_check
        %p221 = pneg %p165
      $region34: #{tpu_custom_call.1} parent=11 // pred_check_branch
        %223 = sbr.rel (%p221) target = $region36
      $region35: #{tpu_custom_call.1} parent=11 // pred_region
        _
      $region36: #{tpu_custom_call.1} parent=11 // pred_fallthru
        _
    $region12: #{tpu_custom_call.1} parent=5 // pred_fallthru
      _
    %p224 = scmp.lt.s32.totalorder %s13, 8
    // Predicated region
    $region37: #{tpu_custom_call.1} parent=5 // pred_check
      %p225 = pneg %p224
    $region38: #{tpu_custom_call.1} parent=5 // pred_check_branch
      %227 = sbr.rel (%p225) target = $region40
    $region39: #{tpu_custom_call.1} parent=5 // pred_region
      // Predicated region
      $region41: #{tpu_custom_call.1} parent=39 // pred_check
        %p228 = pneg %p33
      $region42: #{tpu_custom_call.1} parent=39 // pred_check_branch
        %230 = sbr.rel (%p228) target = $region44
      $region43: #{tpu_custom_call.1} parent=39 // pred_region
        %p231 = scmp.lt.s32.totalorder %s13, 7
        %s232 = scalar_select %p231, %s13, 7
        %s233 = smul.addr %s232, 8
        %s234 = scalar_lea.vmem %s0, %s233
      $region44: #{tpu_custom_call.1} parent=39 // pred_fallthru
        _
    $region40: #{tpu_custom_call.1} parent=5 // pred_fallthru
      _
    %p235 = scmp.le.s32.totalorder 1, %s13
    %p236 = scmp.lt.s32.totalorder %s13, 9
    %p237 = pnand %p235, %p236
    %p238 = pneg %p237
    // Predicated region
    $region45: #{tpu_custom_call.1} parent=5 // pred_check
      _
    $region46: #{tpu_custom_call.1} parent=5 // pred_check_branch
      %240 = sbr.rel (%p237) target = $region48
    $region47: #{tpu_custom_call.1} parent=5 // pred_region
      %s241 = ssub.s32 %s13, 1
      %p242 = scmp.lt.s32.totalorder %s18, 7
      %s243 = scalar_select %p242, %s18, 7
      %s244 = smul.addr %s243, 8
      %s245 = scalar_lea.vmem %s0, %s244
      %p246 = pneg %p39
      %p247 = pneg %p36
      %p248 = pneg %p60
      %p249 = pneg %p57
      %p250 = pneg %p81
      %p251 = pneg %p78
      %p252 = pneg %p102
      %p253 = pneg %p99
      %p254 = pneg %p123
      %p255 = pneg %p120
      %p256 = pneg %p144
      %p257 = pneg %p141
      %p258 = pneg %p165
      %p259 = pneg %p162
      %p260 = pneg %p191
      %p261 = pneg %p188
      %p262 = scmp.lt.s32.totalorder %s18, 7
      %s263 = scalar_select %p262, %s18, 7
      %s264 = smul.addr %s263, 8
      %s265 = scalar_lea.vmem %s7, %s264
      %p266 = scmp.lt.s32.totalorder %s18, 7
      %s267 = scalar_select %p266, %s18, 7
      %s268 = smul.addr %s267, 8
      %s269 = scalar_lea.vmem %s0, %s268
      %p270 = scmp.lt.s32.totalorder %s18, 7
      %s271 = scalar_select %p270, %s18, 7
      %s272 = smul.addr %s271, 8
      %s273 = scalar_lea.vmem %s7, %s272
      %v275 = vld [vmem:[%s269] sm:$0xff]
      %v276 = vpack.c.bf16 %v275, %v275
      %v277 = vld [vmem:[%s1] sm:$0xf]
      %v278 = vld [vmem:[%s1 + $0x4] sm:$0xf]
      %v279 = vld [vmem:[%s1 + $0x8] sm:$0xf]
      %v280 = vld [vmem:[%s1 + $0xc] sm:$0xf]
      %v281 = vld [vmem:[%s1 + $0x10] sm:$0xf]
      %v282 = vld [vmem:[%s1 + $0x14] sm:$0xf]
      %v283 = vld [vmem:[%s2] sm:$0x1]
      %v285 = vlaneseq
      %v286 = vshrl.u32 %v285, 7
      %v287 = vsub.s32 0, %v286
      %v288 = vrot.slane %v283, %v287
      %v296 = vunpack.c.l.b16 %v277
      %v297 = vunpack.c.l.b16 %v278
      %v298 = vunpack.c.l.b16 %v279
      %v299 = vunpack.c.l.b16 %v280
      %v300 = vunpack.c.l.b16 %v281
      %v301 = vunpack.c.l.b16 %v282
      %v302 = vpack.c.b16 %v297, %v296
      %v303 = vpack.c.b16 %v299, %v298
      %v304 = vpack.c.b16 %v301, %v300
      %vm308 = vcmask 392192
      %v310 = vsel %vm308, %v276, 0
      %312 = vmatprep.subr.bf16.mxu0 0
      %313 = vmatpush1.bf16.msra.mxu0 %v302
      %314 = vmatprep.subr.bf16.mxu0 0
      %315 = vmatpush1.bf16.msra.mxu0 %v303
      %316 = vmatprep.subr.bf16.mxu0 0
      %317 = vmatpush1.bf16.msra.mxu0 %v304
      %318 = vmatprep.subr.bf16.mxu0 0
      %319 = vmatpush1.bf16.msra.mxu0 0
      %320 = vmatprep.subr.bf16.mxu0 0
      %321 = vmatpush1.bf16.msra.mxu0 0
      %322 = vmatprep.subr.bf16.mxu0 0
      %323 = vmatpush1.bf16.msra.mxu0 0
      %324 = vmatprep.subr.bf16.mxu0 0
      %325 = vmatpush1.bf16.msra.mxu0 0
      %326 = vmatprep.subr.bf16.mxu0 0
      %327 = vmatpush1.bf16.msra.mxu0 0
      %328 = vmatprep.subr.bf16.mxu0 0
      %329 = vmatpush1.bf16.msra.mxu0 0
      %330 = vmatprep.subr.bf16.mxu0 0
      %331 = vmatpush1.bf16.msra.mxu0 0
      %332 = vmatprep.subr.bf16.mxu0 0
      %333 = vmatpush1.bf16.msra.mxu0 0
      %334 = vmatprep.subr.bf16.mxu0 0
      %335 = vmatpush1.bf16.msra.mxu0 0
      %336 = vmatprep.subr.bf16.mxu0 0
      %337 = vmatpush1.bf16.msra.mxu0 0
      %338 = vmatprep.subr.bf16.mxu0 0
      %339 = vmatpush1.bf16.msra.mxu0 0
      %340 = vmatprep.subr.bf16.mxu0 0
      %341 = vmatpush1.bf16.msra.mxu0 0
      %342 = vmatprep.subr.bf16.mxu0 0
      %343 = vmatpush1.bf16.msra.mxu0 0
      %344 = vmatprep.mubr.bf16.mxu0 0
      %345 = vmatmul.mubr.bf16.gmra.mrb[0].mxu0 %v310
      %v346 = vpop.f32.mrb[0].mxu0
      %v347 = vadd.f32 %v288, %v346
      %v348 = vpop.f32.mrb[0].mxu0
      %v349 = vpop.f32.mrb[0].mxu0
      %v350 = vpop.f32.mrb[0].mxu0
      %351 = vdwg.mxu0
      %v352 = vmax.f32 %v347, 0.0
      %v353 = vpack.c.bf16 %v352, %v352
      %v354 = vld [vmem:[%s3] sm:$0xf]
      %v355 = vld [vmem:[%s3 + $0x4] sm:$0xf]
      %v356 = vld [vmem:[%s3 + $0x8] sm:$0xf]
      %v357 = vld [vmem:[%s3 + $0xc] sm:$0xf]
      %v358 = vld [vmem:[%s3 + $0x10] sm:$0xf]
      %v359 = vld [vmem:[%s3 + $0x14] sm:$0xf]
      %v360 = vld [vmem:[%s3 + $0x18] sm:$0xf]
      %v361 = vld [vmem:[%s3 + $0x1c] sm:$0xf]
      %v362 = vld [vmem:[%s3 + $0x20] sm:$0xf]
      %v363 = vld [vmem:[%s3 + $0x24] sm:$0xf]
      %v364 = vld [vmem:[%s3 + $0x28] sm:$0xf]
      %v365 = vld [vmem:[%s3 + $0x2c] sm:$0xf]
      %v366 = vld [vmem:[%s3 + $0x30] sm:$0xf]
      %v367 = vld [vmem:[%s3 + $0x34] sm:$0xf]
      %v368 = vld [vmem:[%s3 + $0x38] sm:$0xf]
      %v369 = vld [vmem:[%s3 + $0x3c] sm:$0xf]
      %v370 = vld [vmem:[%s4] sm:$0x1]
      %v372 = vlaneseq
      %v373 = vshrl.u32 %v372, 7
      %v374 = vsub.s32 0, %v373
      %v375 = vrot.slane %v370, %v374
      %v393 = vunpack.c.l.b16 %v354
      %v394 = vunpack.c.l.b16 %v355
      %v395 = vunpack.c.l.b16 %v356
      %v396 = vunpack.c.l.b16 %v357
      %v397 = vunpack.c.l.b16 %v358
      %v398 = vunpack.c.l.b16 %v359
      %v399 = vunpack.c.l.b16 %v360
      %v400 = vunpack.c.l.b16 %v361
      %v401 = vunpack.c.l.b16 %v362
      %v402 = vunpack.c.l.b16 %v363
      %v403 = vunpack.c.l.b16 %v364
      %v404 = vunpack.c.l.b16 %v365
      %v405 = vunpack.c.l.b16 %v366
      %v406 = vunpack.c.l.b16 %v367
      %v407 = vunpack.c.l.b16 %v368
      %v408 = vunpack.c.l.b16 %v369
      %v409 = vpack.c.b16 %v394, %v393
      %v410 = vpack.c.b16 %v396, %v395
      %v411 = vpack.c.b16 %v398, %v397
      %v412 = vpack.c.b16 %v400, %v399
      %v413 = vpack.c.b16 %v402, %v401
      %v414 = vpack.c.b16 %v404, %v403
      %v415 = vpack.c.b16 %v406, %v405
      %v416 = vpack.c.b16 %v408, %v407
      %425 = vmatprep.subr.bf16.mxu0 0
      %426 = vmatpush1.bf16.msra.mxu0 %v409
      %427 = vmatprep.subr.bf16.mxu0 0
      %428 = vmatpush1.bf16.msra.mxu0 %v410
      %429 = vmatprep.subr.bf16.mxu0 0
      %430 = vmatpush1.bf16.msra.mxu0 %v411
      %431 = vmatprep.subr.bf16.mxu0 0
      %432 = vmatpush1.bf16.msra.mxu0 %v412
      %433 = vmatprep.subr.bf16.mxu0 0
      %434 = vmatpush1.bf16.msra.mxu0 %v413
      %435 = vmatprep.subr.bf16.mxu0 0
      %436 = vmatpush1.bf16.msra.mxu0 %v414
      %437 = vmatprep.subr.bf16.mxu0 0
      %438 = vmatpush1.bf16.msra.mxu0 %v415
      %439 = vmatprep.subr.bf16.mxu0 0
      %440 = vmatpush1.bf16.msra.mxu0 %v416
      %441 = vmatprep.subr.bf16.mxu0 0
      %442 = vmatpush1.bf16.msra.mxu0 0
      %443 = vmatprep.subr.bf16.mxu0 0
      %444 = vmatpush1.bf16.msra.mxu0 0
      %445 = vmatprep.subr.bf16.mxu0 0
      %446 = vmatpush1.bf16.msra.mxu0 0
      %447 = vmatprep.subr.bf16.mxu0 0
      %448 = vmatpush1.bf16.msra.mxu0 0
      %449 = vmatprep.subr.bf16.mxu0 0
      %450 = vmatpush1.bf16.msra.mxu0 0
      %451 = vmatprep.subr.bf16.mxu0 0
      %452 = vmatpush1.bf16.msra.mxu0 0
      %453 = vmatprep.subr.bf16.mxu0 0
      %454 = vmatpush1.bf16.msra.mxu0 0
      %455 = vmatprep.subr.bf16.mxu0 0
      %456 = vmatpush1.bf16.msra.mxu0 0
      %457 = vmatprep.mubr.bf16.mxu0 0
      %458 = vmatmul.mubr.bf16.gmra.mrb[0].mxu0 %v353
      %v459 = vpop.f32.mrb[0].mxu0
      %v460 = vadd.f32 %v375, %v459
      %v461 = vpop.f32.mrb[0].mxu0
      %v462 = vpop.f32.mrb[0].mxu0
      %v463 = vpop.f32.mrb[0].mxu0
      %464 = vdwg.mxu0
      %v465 = vmax.f32 %v460, 0.0
      %v466 = vpack.c.bf16 %v465, %v465
      %v467 = vld [vmem:[%s5] sm:$0xf]
      %v468 = vld [vmem:[%s5 + $0x4] sm:$0xf]
      %v469 = vld [vmem:[%s5 + $0x8] sm:$0xf]
      %v470 = vld [vmem:[%s5 + $0xc] sm:$0xf]
      %v471 = vld [vmem:[%s5 + $0x10] sm:$0xf]
      %v472 = vld [vmem:[%s5 + $0x14] sm:$0xf]
      %v473 = vld [vmem:[%s5 + $0x18] sm:$0xf]
      %v474 = vld [vmem:[%s5 + $0x1c] sm:$0xf]
      %v475 = vld [vmem:[%s5 + $0x20] sm:$0xf]
      %v476 = vld [vmem:[%s5 + $0x24] sm:$0xf]
      %v477 = vld [vmem:[%s5 + $0x28] sm:$0xf]
      %v478 = vld [vmem:[%s5 + $0x2c] sm:$0xf]
      %v479 = vld [vmem:[%s5 + $0x30] sm:$0xf]
      %v480 = vld [vmem:[%s5 + $0x34] sm:$0xf]
      %v481 = vld [vmem:[%s5 + $0x38] sm:$0xf]
      %v482 = vld [vmem:[%s5 + $0x3c] sm:$0xf]
      %v483 = vld [vmem:[%s6] sm:$0x1]
      %v485 = vlaneseq
      %v486 = vshrl.u32 %v485, 7
      %v487 = vsub.s32 0, %v486
      %v488 = vrot.slane %v483, %v487
      %v506 = vunpack.c.l.b16 %v467
      %v507 = vunpack.c.l.b16 %v468
      %v508 = vunpack.c.l.b16 %v469
      %v509 = vunpack.c.l.b16 %v470
      %v510 = vunpack.c.l.b16 %v471
      %v511 = vunpack.c.l.b16 %v472
      %v512 = vunpack.c.l.b16 %v473
      %v513 = vunpack.c.l.b16 %v474
      %v514 = vunpack.c.l.b16 %v475
      %v515 = vunpack.c.l.b16 %v476
      %v516 = vunpack.c.l.b16 %v477
      %v517 = vunpack.c.l.b16 %v478
      %v518 = vunpack.c.l.b16 %v479
      %v519 = vunpack.c.l.b16 %v480
      %v520 = vunpack.c.l.b16 %v481
      %v521 = vunpack.c.l.b16 %v482
      %v522 = vpack.c.b16 %v507, %v506
      %v523 = vpack.c.b16 %v509, %v508
      %v524 = vpack.c.b16 %v511, %v510
      %v525 = vpack.c.b16 %v513, %v512
      %v526 = vpack.c.b16 %v515, %v514
      %v527 = vpack.c.b16 %v517, %v516
      %v528 = vpack.c.b16 %v519, %v518
      %v529 = vpack.c.b16 %v521, %v520
      %538 = vmatprep.subr.bf16.mxu0 0
      %539 = vmatpush1.bf16.msra.mxu0 %v522
      %540 = vmatprep.subr.bf16.mxu0 0
      %541 = vmatpush1.bf16.msra.mxu0 %v523
      %542 = vmatprep.subr.bf16.mxu0 0
      %543 = vmatpush1.bf16.msra.mxu0 %v524
      %544 = vmatprep.subr.bf16.mxu0 0
      %545 = vmatpush1.bf16.msra.mxu0 %v525
      %546 = vmatprep.subr.bf16.mxu0 0
      %547 = vmatpush1.bf16.msra.mxu0 %v526
      %548 = vmatprep.subr.bf16.mxu0 0
      %549 = vmatpush1.bf16.msra.mxu0 %v527
      %550 = vmatprep.subr.bf16.mxu0 0
      %551 = vmatpush1.bf16.msra.mxu0 %v528
      %552 = vmatprep.subr.bf16.mxu0 0
      %553 = vmatpush1.bf16.msra.mxu0 %v529
      %554 = vmatprep.subr.bf16.mxu0 0
      %555 = vmatpush1.bf16.msra.mxu0 0
      %556 = vmatprep.subr.bf16.mxu0 0
      %557 = vmatpush1.bf16.msra.mxu0 0
      %558 = vmatprep.subr.bf16.mxu0 0
      %559 = vmatpush1.bf16.msra.mxu0 0
      %560 = vmatprep.subr.bf16.mxu0 0
      %561 = vmatpush1.bf16.msra.mxu0 0
      %562 = vmatprep.subr.bf16.mxu0 0
      %563 = vmatpush1.bf16.msra.mxu0 0
      %564 = vmatprep.subr.bf16.mxu0 0
      %565 = vmatpush1.bf16.msra.mxu0 0
      %566 = vmatprep.subr.bf16.mxu0 0
      %567 = vmatpush1.bf16.msra.mxu0 0
      %568 = vmatprep.subr.bf16.mxu0 0
      %569 = vmatpush1.bf16.msra.mxu0 0
      %570 = vmatprep.mubr.bf16.mxu0 0
      %571 = vmatmul.mubr.bf16.gmra.mrb[0].mxu0 %v466
      %v572 = vpop.f32.mrb[0].mxu0
      %v573 = vadd.f32 %v488, %v572
      %v574 = vpop.f32.mrb[0].mxu0
      %v575 = vpop.f32.mrb[0].mxu0
      %v576 = vpop.f32.mrb[0].mxu0
      %577 = vdwg.mxu0
      %vm578 = vcmask 97280
      %579 = vst.msk [vmem:[%s273] sm:$0xff] %vm578, %v573
      %p580 = scmp.lt.s32.totalorder %s18, 7
      %s581 = scalar_select %p580, %s18, 7
      %s582 = smul.addr %s581, 8
      %s583 = scalar_lea.vmem %s7, %s582
      // Predicated region
      $region49: #{tpu_custom_call.1} parent=47 // pred_check
        %p584 = pneg %p188
      $region50: #{tpu_custom_call.1} parent=47 // pred_check_branch
        %586 = sbr.rel (%p584) target = $region52
      $region51: #{tpu_custom_call.1} parent=47 // pred_region
        _
      $region52: #{tpu_custom_call.1} parent=47 // pred_fallthru
        _
    $region48: #{tpu_custom_call.1} parent=5 // pred_fallthru
      _
    %p587 = scmp.le.s32.totalorder 2, %s13
    // Predicated region
    $region53: #{tpu_custom_call.1} parent=5 // pred_check
      %p588 = pneg %p587
    $region54: #{tpu_custom_call.1} parent=5 // pred_check_branch
      %590 = sbr.rel (%p588) target = $region56
    $region55: #{tpu_custom_call.1} parent=5 // pred_region
      %s591 = ssub.s32 %s13, 2
      // Predicated region
      $region57: #{tpu_custom_call.1} parent=55 // pred_check
        %p592 = pneg %p194
      $region58: #{tpu_custom_call.1} parent=55 // pred_check_branch
        %594 = sbr.rel (%p592) target = $region60
      $region59: #{tpu_custom_call.1} parent=55 // pred_region
        %p595 = scmp.lt.s32.totalorder %s19, 7
        %s596 = scalar_select %p595, %s19, 7
        %s597 = smul.addr %s596, 8
        %s598 = scalar_lea.vmem %s7, %s597
      $region60: #{tpu_custom_call.1} parent=55 // pred_fallthru
        _
    $region56: #{tpu_custom_call.1} parent=5 // pred_fallthru
      _
  $region6: #{tpu_custom_call.1} parent=0 // loop_footer
    %s17 = sadd.s32 1, %s13
  $region7: #{tpu_custom_call.1} parent=0 // loop_footer_branch
    %12 = sbr.rel target = $region3
  $region8: #{tpu_custom_call.1} parent=0 // loop_exit
    _

</llo_original>
